<compile_context>
chip_gen: v6e
topology: v6e:2x2x1
jax: 0.10.0
libtpu: 0.0.40
codegen_flags: <defaults>
</compile_context>

<pallas_src>
import functools

import jax
import jax.numpy as jnp
from jax import lax
from jax.experimental import pallas as pl
from jax.experimental.pallas import tpu as pltpu


def _rwf_kernel(x_ref, v_ref, s_ref, b_ref, o_ref, *scratch, k_rem: int):
    """One (tm, tn) output tile; K reduction runs over grid axis 2.

    x_ref: (tm, tk)   input activations
    v_ref: (tn, tk)   weight V in its native (out, in) layout
    s_ref: (1, tn)    log-scale factors
    b_ref: (1, tn)    bias
    o_ref: (tm, tn)   output tile (f32 outputs double as the accumulator)
    scratch: optional (tm, tn) f32 accumulator for non-f32 outputs
    k_rem: static size of the ragged tail-K block (0 if K divides evenly)
    """
    acc_ref = scratch[0] if scratch else o_ref
    k = pl.program_id(2)
    nk = pl.num_programs(2)

    @pl.when(k == 0)
    def _init():
        acc_ref[...] = jnp.zeros_like(acc_ref)

    def _accumulate(x, v):
        # Contract the minor (K) dims of both operands: x @ V.T on the MXU,
        # no HBM- or VMEM-level transpose of the weight tile needed.
        acc_ref[...] += lax.dot_general(
            x, v,
            dimension_numbers=(((1,), (1,)), ((), ())),
            preferred_element_type=jnp.float32,
        )

    if k_rem:
        # Ragged tail-K block: out-of-bounds columns of the streamed tiles are
        # undefined, so zero them before they feed the reduction. This static
        # branch is only emitted when K is actually ragged; full K blocks stay
        # on the mask-free fast path.
        @pl.when(k < nk - 1)
        def _body():
            _accumulate(x_ref[...], v_ref[...])

        @pl.when(k == nk - 1)
        def _tail():
            x = x_ref[...]
            v = v_ref[...]
            xm = lax.broadcasted_iota(jnp.int32, x.shape, 1) < k_rem
            vm = lax.broadcasted_iota(jnp.int32, v.shape, 1) < k_rem
            _accumulate(jnp.where(xm, x, 0.0), jnp.where(vm, v, 0.0))
    else:
        _accumulate(x_ref[...], v_ref[...])

    @pl.when(k == nk - 1)
    def _finalize():
        # Once per output tile: exp on the EUP, per-output-column scale + bias
        # on the VPU. Scaling the output columns by exp(s) is mathematically
        # identical to scaling the rows of V.
        scale = jnp.exp(s_ref[...])                               # (1, tn)
        o_ref[...] = (acc_ref[...] * scale + b_ref[...]).astype(o_ref.dtype)


def _round_up(a: int, b: int) -> int:
    return (a + b - 1) // b * b


@functools.partial(jax.jit, static_argnames=("tm", "tn", "tk"))
def rwf_linear(x, V, s, bias, *, tm=None, tn=None, tk=None):
    """Random Weight Factorized Linear forward: x @ (exp(s)[:,None] * V).T + bias.

    x:    (batch, in_features)
    V:    (out_features, in_features)  -- used in its native layout (no transpose)
    s:    (out_features,)
    bias: (out_features,)
    returns (batch, out_features)
    """
    batch, in_features = x.shape
    out_features = V.shape[0]
    out_dtype = x.dtype

    # Tile sizes. Block dims equal to the full array dim are always legal;
    # otherwise the sublane dim must be a multiple of 8 and the lane dim a
    # multiple of 128 (ragged edge blocks are fine -- output writes are masked).
    if tm is None:
        tm = batch if batch <= 512 else 512
    if tn is None:
        tn = out_features if out_features <= 512 else 512
    if tk is None:
        tk = in_features if in_features <= 1024 else 1024

    # v7x has two TensorCores sharing the "parallel" grid axes; if the whole
    # problem fits in one (M, N) tile but is big enough to be worth splitting,
    # halve the M tile so both cores get work. (No-op on 1-TC v5e/v6e.)
    if pl.cdiv(batch, tm) * pl.cdiv(out_features, tn) == 1 and batch >= 128:
        tm = _round_up(pl.cdiv(batch, 2), 8)

    grid = (pl.cdiv(batch, tm), pl.cdiv(out_features, tn), pl.cdiv(in_features, tk))
    k_rem = in_features % tk  # 0 when K divides evenly (or tk == in_features)

    # f32 outputs accumulate directly into the resident output block; keep a
    # separate f32 VMEM scratch only for lower-precision outputs.
    use_scratch = out_dtype != jnp.float32
    scratch_shapes = [pltpu.VMEM((tm, tn), jnp.float32)] if use_scratch else []

    s2 = s.reshape(1, out_features)
    b2 = bias.reshape(1, out_features)

    flops = 2 * batch * out_features * in_features
    bytes_accessed = 4 * (batch * in_features + out_features * in_features
                          + batch * out_features + 2 * out_features)

    return pl.pallas_call(
        functools.partial(_rwf_kernel, k_rem=k_rem),
        out_shape=jax.ShapeDtypeStruct((batch, out_features), out_dtype),
        grid_spec=pltpu.PrefetchScalarGridSpec(
            num_scalar_prefetch=0,
            grid=grid,
            in_specs=[
                pl.BlockSpec((tm, tk), lambda i, j, k: (i, k)),   # x tile
                pl.BlockSpec((tn, tk), lambda i, j, k: (j, k)),   # V tile (native layout)
                pl.BlockSpec((1, tn), lambda i, j, k: (0, j)),    # s slice
                pl.BlockSpec((1, tn), lambda i, j, k: (0, j)),    # bias slice
            ],
            out_specs=pl.BlockSpec((tm, tn), lambda i, j, k: (i, j)),
            scratch_shapes=scratch_shapes,
        ),
        compiler_params=pltpu.CompilerParams(
            dimension_semantics=("parallel", "parallel", "arbitrary"),
            # 48 MiB scoped VMEM: comfortably fits the double-buffered default
            # tiles (~10 MiB) on every generation and stays under v7x's 64 MiB.
            vmem_limit_bytes=48 * 1024 * 1024,
        ),
        cost_estimate=pl.CostEstimate(
            flops=flops,
            bytes_accessed=bytes_accessed,
            transcendentals=out_features,
        ),
    )(x, V, s2, b2)


if __name__ == "__main__":
    key = jax.random.PRNGKey(0)
    k_x, k_s, k_v = jax.random.split(key, 3)

    batch = 8
    in_features = 32
    out_features = 64
    mu, sigma = 1.0, 0.1

    # Deterministic parameter init mirroring the PyTorch module's __init__.
    s = jax.random.normal(k_s, (out_features,), dtype=jnp.float32) * sigma + mu
    xavier_std = (2.0 / (in_features + out_features)) ** 0.5   # xavier_normal_, gain=1
    V = jax.random.normal(k_v, (out_features, in_features), dtype=jnp.float32) * xavier_std
    bias = jnp.zeros((out_features,), dtype=jnp.float32)

    x = jax.random.normal(k_x, (batch, in_features), dtype=jnp.float32)

    out = rwf_linear(x, V, s, bias)
    out = jax.block_until_ready(out)

    # Reference check in plain JAX (same math as the PyTorch forward).
    ref = x @ (jnp.exp(s)[:, None] * V).T + bias
    assert out.shape == (batch, out_features)
    assert jnp.allclose(out, ref, atol=1e-5, rtol=1e-5)

    print("KERNEL_OK")
</pallas_src>

<mosaic_0001>
module attributes {stable_mosaic.version = 11 : i64} {
  func.func @_rwf_kernel(%arg0: i32, %arg1: i32, %arg2: i32, %arg3: memref<8x32xf32, #tpu.memory_space<vmem>>, %arg4: memref<64x32xf32, #tpu.memory_space<vmem>>, %arg5: memref<1x64xf32, #tpu.memory_space<vmem>>, %arg6: memref<1x64xf32, #tpu.memory_space<vmem>>, %arg7: memref<8x64xf32, #tpu.memory_space<vmem>>) attributes {dimension_semantics = [#tpu.dimension_semantics<parallel>, #tpu.dimension_semantics<parallel>, #tpu.dimension_semantics<arbitrary>], iteration_bounds = array<i64: 1, 1, 1>, scalar_prefetch = 0 : i64, scratch_operands = 0 : i64, tpu.core_type = #tpu.core_type<tc>, window_params = [{transform_indices = @transform_0, window_bounds = array<i64: 8, 32>}, {transform_indices = @transform_1, window_bounds = array<i64: 64, 32>}, {transform_indices = @transform_2, window_bounds = array<i64: 1, 64>}, {transform_indices = @transform_3, window_bounds = array<i64: 1, 64>}, {transform_indices = @transform_4, window_bounds = array<i64: 8, 64>}]} {
    %c0_i32 = arith.constant 0 : i32
    %0 = arith.cmpi eq, %arg2, %c0_i32 : i32
    %1 = arith.extui %0 : i1 to i32
    %c0_i32_0 = arith.constant 0 : i32
    %2 = arith.cmpi ne, %1, %c0_i32_0 : i32
    scf.if %2 {
      %cst_10 = arith.constant 0.000000e+00 : f32
      %12 = vector.broadcast %cst_10 : f32 to vector<8x64xf32>
      %c0_11 = arith.constant 0 : index
      %c0_12 = arith.constant 0 : index
      %13 = vector.load %arg7[%c0_11, %c0_12] : memref<8x64xf32, #tpu.memory_space<vmem>>, vector<8x64xf32>
      tpu.vector_store %arg7[%c0_11, %c0_12], %12 {strides = array<i32>} : memref<8x64xf32, #tpu.memory_space<vmem>>, vector<8x64xf32>,
    } else {
    }
    %c0 = arith.constant 0 : index
    %c0_1 = arith.constant 0 : index
    %3 = vector.load %arg3[%c0, %c0_1] : memref<8x32xf32, #tpu.memory_space<vmem>>, vector<8x32xf32>
    %c0_2 = arith.constant 0 : index
    %c0_3 = arith.constant 0 : index
    %4 = vector.load %arg4[%c0_2, %c0_3] : memref<64x32xf32, #tpu.memory_space<vmem>>, vector<64x32xf32>
    %c0_4 = arith.constant 0 : index
    %c0_5 = arith.constant 0 : index
    %5 = vector.load %arg7[%c0_4, %c0_5] : memref<8x64xf32, #tpu.memory_space<vmem>>, vector<8x64xf32>
    %cst = arith.constant dense<0.000000e+00> : vector<8x64xf32>
    %6 = tpu.matmul %3, %4, %cst {dimension_numbers = #tpu.dot_dimension_numbers<[1], [1], [0], [0], [0, 0, 1, 0], [], []>} : vector<8x32xf32>, vector<64x32xf32>, vector<8x64xf32> -> vector<8x64xf32>
    %7 = arith.addf %5, %6 : vector<8x64xf32>
    %c0_6 = arith.constant 0 : index
    %c0_7 = arith.constant 0 : index
    %8 = vector.load %arg7[%c0_6, %c0_7] : memref<8x64xf32, #tpu.memory_space<vmem>>, vector<8x64xf32>
    tpu.vector_store %arg7[%c0_6, %c0_7], %7 {strides = array<i32>} : memref<8x64xf32, #tpu.memory_space<vmem>>, vector<8x64xf32>,
    %c0_i32_8 = arith.constant 0 : i32
    %9 = arith.cmpi eq, %arg2, %c0_i32_8 : i32
    %10 = arith.extui %9 : i1 to i32
    %c0_i32_9 = arith.constant 0 : i32
    %11 = arith.cmpi ne, %10, %c0_i32_9 : i32
    scf.if %11 {
      %c0_10 = arith.constant 0 : index
      %c0_11 = arith.constant 0 : index
      %12 = vector.load %arg5[%c0_10, %c0_11] : memref<1x64xf32, #tpu.memory_space<vmem>>, vector<1x64xf32>
      %13 = math.exp %12 : vector<1x64xf32>
      %c0_12 = arith.constant 0 : index
      %c0_13 = arith.constant 0 : index
      %14 = vector.load %arg7[%c0_12, %c0_13] : memref<8x64xf32, #tpu.memory_space<vmem>>, vector<8x64xf32>
      %15 = vector.broadcast %13 : vector<1x64xf32> to vector<8x64xf32>
      %16 = arith.mulf %14, %15 : vector<8x64xf32>
      %c0_14 = arith.constant 0 : index
      %c0_15 = arith.constant 0 : index
      %17 = vector.load %arg6[%c0_14, %c0_15] : memref<1x64xf32, #tpu.memory_space<vmem>>, vector<1x64xf32>
      %18 = vector.broadcast %17 : vector<1x64xf32> to vector<8x64xf32>
      %19 = arith.addf %16, %18 : vector<8x64xf32>
      %c0_16 = arith.constant 0 : index
      %c0_17 = arith.constant 0 : index
      %20 = vector.load %arg7[%c0_16, %c0_17] : memref<8x64xf32, #tpu.memory_space<vmem>>, vector<8x64xf32>
      tpu.vector_store %arg7[%c0_16, %c0_17], %19 {strides = array<i32>} : memref<8x64xf32, #tpu.memory_space<vmem>>, vector<8x64xf32>,
    } else {
    }
    return
  }
  func.func @transform_0(%arg0: i32, %arg1: i32, %arg2: i32) -> (i32, i32) {
    %c0_i32 = arith.constant 0 : i32
    return %arg0, %arg2 : i32, i32
  }
  func.func @transform_1(%arg0: i32, %arg1: i32, %arg2: i32) -> (i32, i32) {
    %c0_i32 = arith.constant 0 : i32
    return %arg1, %arg2 : i32, i32
  }
  func.func @transform_2(%arg0: i32, %arg1: i32, %arg2: i32) -> (i32, i32) {
    %c0_i32 = arith.constant 0 : i32
    %c0_i32_0 = arith.constant 0 : i32
    return %c0_i32, %arg1 : i32, i32
  }
  func.func @transform_3(%arg0: i32, %arg1: i32, %arg2: i32) -> (i32, i32) {
    %c0_i32 = arith.constant 0 : i32
    %c0_i32_0 = arith.constant 0 : i32
    return %c0_i32, %arg1 : i32, i32
  }
  func.func @transform_4(%arg0: i32, %arg1: i32, %arg2: i32) -> (i32, i32) {
    %c0_i32 = arith.constant 0 : i32
    return %arg0, %arg1 : i32, i32
  }
}

</mosaic_0001>

<llo_original>
// kernel: rwf_linear.1
$region0: #{rwf_linear.1}
  #allocation0 [shape = 'u32[]', space=smem, size = 0x4, offset = 0x4, fixed_abs, tag = 'smem constant byte address 0x4 - core index']
  #allocation1 [shape = 'u32[144,128]{1,0:T(1,128)}', space=vmem, size = 0x12000, scoped, tag = 'internal scratch']
  %s0 = inlined_call_operand.vmem [shape: f32[8,32], index: 0, kind: input, shape index: {}]
  %s1 = inlined_call_operand.vmem [shape: f32[64,32], index: 1, kind: input, shape index: {}]
  %s2 = inlined_call_operand.vmem [shape: f32[1,64], index: 2, kind: input, shape index: {}]
  %s3 = inlined_call_operand.vmem [shape: f32[1,64], index: 3, kind: input, shape index: {}]
  %s4 = inlined_call_operand.hbm [shape: f32[8,64], index: 4, kind: output, shape index: {}]
  %s5 = sld [smem:[#allocation0]]
  $region34: #{rwf_linear.1} parent=0
    _
  %s7 = ssub.s32 1, %s5
  %s8 = scalar_select 0, %s7, %s5
  $region1: #{rwf_linear.1} parent=0
    #allocation2 [shape = 'u8[4096]{0}', space=vmem, size = 0x1000, scoped, tag = 'output window, operand 0, single buffered']
    #allocation3 [shape = 's32[1]{0}', space=sflag, size = 0x4, scoped, tag = 'scoped memory for rwf_linear.1']
    %9 = vsyncpa [#allocation3], 0
    // Predicated region
    $region2: #{rwf_linear.1} parent=1 // pred_check
      _
    $region3: #{rwf_linear.1} parent=1 // pred_check_branch
      %11 = sbr.rel (0) target = $region5
    $region4: #{rwf_linear.1} parent=1 // pred_region
      _
    $region5: #{rwf_linear.1} parent=1 // pred_fallthru
      _
    // Predicated region
    $region6: #{rwf_linear.1} parent=1 // pred_check
      _
    $region7: #{rwf_linear.1} parent=1 // pred_check_branch
      %13 = sbr.rel (0) target = $region9
    $region8: #{rwf_linear.1} parent=1 // pred_region
      _
    $region9: #{rwf_linear.1} parent=1 // pred_fallthru
      _
    // Predicated region
    $region10: #{rwf_linear.1} parent=1 // pred_check
      _
    $region11: #{rwf_linear.1} parent=1 // pred_check_branch
      %15 = sbr.rel (0) target = $region13
    $region12: #{rwf_linear.1} parent=1 // pred_region
      _
    $region13: #{rwf_linear.1} parent=1 // pred_fallthru
      _
    // Predicated region
    $region14: #{rwf_linear.1} parent=1 // pred_check
      _
    $region15: #{rwf_linear.1} parent=1 // pred_check_branch
      %17 = sbr.rel (0) target = $region17
    $region16: #{rwf_linear.1} parent=1 // pred_region
      _
    $region17: #{rwf_linear.1} parent=1 // pred_fallthru
      _
    %p18 = scmp.eq.s32.totalorder 0, 0
    // Predicated region
    $region18: #{rwf_linear.1} parent=1 // pred_check
      %p19 = pneg %p18
    $region19: #{rwf_linear.1} parent=1 // pred_check_branch
      %21 = sbr.rel (%p19) target = $region21
    $region20: #{rwf_linear.1} parent=1 // pred_region
      %vm22 = vcmask 523264
      %23 = vst.msk [vmem:[#allocation2] sm:$0xff] %vm22, 0.0
    $region21: #{rwf_linear.1} parent=1 // pred_fallthru
      _
    %v24 = vld [vmem:[%s0] sm:$0xff]
    %v25 = vld [vmem:[%s1] sm:$0xff]
    %v26 = vld [vmem:[%s1 + $0x8] sm:$0xff]
    %v27 = vld [vmem:[%s1 + $0x10] sm:$0xff]
    %v28 = vld [vmem:[%s1 + $0x18] sm:$0xff]
    %v29 = vld [vmem:[%s1 + $0x20] sm:$0xff]
    %v30 = vld [vmem:[%s1 + $0x28] sm:$0xff]
    %v31 = vld [vmem:[%s1 + $0x30] sm:$0xff]
    %v32 = vld [vmem:[%s1 + $0x38] sm:$0xff]
    %v33 = vld [vmem:[#allocation2] sm:$0xff]
    %vm34 = vcmask 261120
    %v36 = vsel %vm34, %v24, 0
    %v39 = vsel %vm34, %v25, 0
    %v42 = vsel %vm34, %v26, 0
    %v45 = vsel %vm34, %v27, 0
    %v48 = vsel %vm34, %v28, 0
    %v51 = vsel %vm34, %v29, 0
    %v54 = vsel %vm34, %v30, 0
    %v57 = vsel %vm34, %v31, 0
    %v60 = vsel %vm34, %v32, 0
    %62 = vmatprep.subr.mxu0 0.0
    %63 = vmatpush1.xpose.msra.mxu0 0.0
    %64 = vmatprep.subr.mxu0 0.0
    %65 = vmatpush1.xpose.msra.mxu0 0.0
    %66 = vmatprep.subr.mxu0 0.0
    %67 = vmatpush1.xpose.msra.mxu0 0.0
    %68 = vmatprep.subr.mxu0 0.0
    %69 = vmatpush1.xpose.msra.mxu0 0.0
    %70 = vmatprep.subr.mxu0 0.0
    %71 = vmatpush1.xpose.msra.mxu0 0.0
    %72 = vmatprep.subr.mxu0 0.0
    %73 = vmatpush1.xpose.msra.mxu0 0.0
    %74 = vmatprep.subr.mxu0 0.0
    %75 = vmatpush1.xpose.msra.mxu0 0.0
    %76 = vmatprep.subr.mxu0 0.0
    %77 = vmatpush1.xpose.msra.mxu0 0.0
    %78 = vmatprep.subr.mxu0 0.0
    %79 = vmatpush1.xpose.msra.mxu0 %v60
    %80 = vmatprep.subr.mxu0 0.0
    %81 = vmatpush1.xpose.msra.mxu0 %v57
    %82 = vmatprep.subr.mxu0 0.0
    %83 = vmatpush1.xpose.msra.mxu0 %v54
    %84 = vmatprep.subr.mxu0 0.0
    %85 = vmatpush1.xpose.msra.mxu0 %v51
    %86 = vmatprep.subr.mxu0 0.0
    %87 = vmatpush1.xpose.msra.mxu0 %v48
    %88 = vmatprep.subr.mxu0 0.0
    %89 = vmatpush1.xpose.msra.mxu0 %v45
    %90 = vmatprep.subr.mxu0 0.0
    %91 = vmatpush1.xpose.msra.mxu0 %v42
    %92 = vmatprep.subr.mxu0 0.0
    %93 = vmatpush1.xpose.msra.mxu0 %v39
    %94 = vmatprep.subr.mxu0 0.0
    %95 = vmatpush2.xpose.msra.mxu0 0.0
    %96 = vmatprep.subr.mxu0 0.0
    %97 = vmatpush2.xpose.msra.mxu0 0.0
    %98 = vmatprep.subr.mxu0 0.0
    %99 = vmatpush2.xpose.msra.mxu0 0.0
    %100 = vmatprep.subr.mxu0 0.0
    %101 = vmatpush2.xpose.msra.mxu0 0.0
    %102 = vmatprep.subr.mxu0 0.0
    %103 = vmatpush2.xpose.msra.mxu0 0.0
    %104 = vmatprep.subr.mxu0 0.0
    %105 = vmatpush2.xpose.msra.mxu0 0.0
    %106 = vmatprep.subr.mxu0 0.0
    %107 = vmatpush2.xpose.msra.mxu0 0.0
    %108 = vmatprep.subr.mxu0 0.0
    %109 = vmatpush2.xpose.msra.mxu0 0.0
    %110 = vmatprep.subr.mxu0 0.0
    %111 = vmatpush2.xpose.msra.mxu0 0.0
    %112 = vmatprep.subr.mxu0 0.0
    %113 = vmatpush2.xpose.msra.mxu0 0.0
    %114 = vmatprep.subr.mxu0 0.0
    %115 = vmatpush2.xpose.msra.mxu0 0.0
    %116 = vmatprep.subr.mxu0 0.0
    %117 = vmatpush2.xpose.msra.mxu0 0.0
    %118 = vmatprep.subr.mxu0 0.0
    %119 = vmatpush2.xpose.msra.mxu0 0.0
    %120 = vmatprep.subr.mxu0 0.0
    %121 = vmatpush2.xpose.msra.mxu0 0.0
    %122 = vmatprep.subr.mxu0 0.0
    %123 = vmatpush2.xpose.msra.mxu0 0.0
    %124 = vmatprep.subr.mxu0 0.0
    %125 = vmatpush2.xpose.msra.mxu0 0.0
    %126 = vmatprep.mubr.f32.mxu0 0.0
    %127 = vmatmul.mubr.f32.gmra.mxu0 %v36
    %v128 = vpop.f32.mrf.mxu0
    %v129 = vadd.f32 0.0, %v128
    %v130 = vpop.f32.mrf.mxu0
    %131 = vdwg.mxu0
    %v132 = vadd.f32 %v33, %v129
    %vm133 = vcmask 523264
    %134 = vst.msk [vmem:[#allocation2] sm:$0xff] %vm133, %v132
    // Predicated region
    $region22: #{rwf_linear.1} parent=1 // pred_check
      %p135 = pneg %p18
    $region23: #{rwf_linear.1} parent=1 // pred_check_branch
      %137 = sbr.rel (%p135) target = $region25
    $region24: #{rwf_linear.1} parent=1 // pred_region
      %v138 = vld [vmem:[%s2] sm:$0x1]
      %v139 = vmul.f32 %v138, 1.442695
      %v140 = vpow.pop %v139
      %v141 = vld [vmem:[#allocation2] sm:$0xff]
      %v143 = vlaneseq
      %v144 = vshrl.u32 %v143, 7
      %v145 = vsub.s32 0, %v144
      %v146 = vrot.slane %v140, %v145
      %v148 = vmul.f32 %v141, %v146
      %v149 = vld [vmem:[%s3] sm:$0x1]
      %v151 = vlaneseq
      %v152 = vshrl.u32 %v151, 7
      %v153 = vsub.s32 0, %v152
      %v154 = vrot.slane %v149, %v153
      %v156 = vadd.f32 %v148, %v154
      %157 = vst.msk [vmem:[#allocation2] sm:$0xff] %vm133, %v156
    $region25: #{rwf_linear.1} parent=1 // pred_fallthru
      _
    // Predicated region
    $region26: #{rwf_linear.1} parent=1 // pred_check
      _
    $region27: #{rwf_linear.1} parent=1 // pred_check_branch
      %159 = sbr.rel (0) target = $region29
    $region28: #{rwf_linear.1} parent=1 // pred_region
      %s161 = ssub.s32 128, 128
      %162 = vsyncadd [#allocation3], %s161
      %s164 = sshll.u32 [#allocation2], 4
      %s165 = int_to_ptr.vmem [resolvable:$true] %s164
      %167 = dma.vmem_to_hbm [thread:$0]  %s165, 128, %s4, [#allocation3]
    $region29: #{rwf_linear.1} parent=1 // pred_fallthru
      _
    // Predicated region
    $region30: #{rwf_linear.1} parent=1 // pred_check
      _
    $region31: #{rwf_linear.1} parent=1 // pred_check_branch
      %169 = sbr.rel (0) target = $region33
    $region32: #{rwf_linear.1} parent=1 // pred_region
      %170 = dma.done [#allocation3], 128
    $region33: #{rwf_linear.1} parent=1 // pred_fallthru
      _
    %171 = vsyncpa [#allocation3], 1

</llo_original>
